<compile_context>
chip_gen: v7x
topology: tpu7x:2x2x1
jax: 0.10.0
libtpu: 0.0.40
codegen_flags: <defaults>
</compile_context>

<pallas_src>
import jax
import jax.numpy as jnp
from jax import lax
from jax.experimental import pallas as pl
from jax.experimental.pallas import tpu as pltpu


def _round_up(v, m):
    return ((v + m - 1) // m) * m


# ----------------------------------------------------------------------------
# Kernel 1: CenterNet focal loss over the heatmap (tiled, per-tile partials).
# ----------------------------------------------------------------------------
_LOGIT_CLAMP = 9.210240366975849  # log((1 - 1e-4) / 1e-4); sigmoid(+/-) = 1e-4 / 1-1e-4


def _make_focal_kernel(num_rows, tile_rows):
    def kernel(logit_ref, gt_ref, out_ref):
        x = logit_ref[...].astype(jnp.float32)
        gt = gt_ref[...].astype(jnp.float32)

        # clamp(sigmoid(x), 1e-4, 1 - 1e-4) == sigmoid(clip(x, +/-LOGIT_CLAMP))
        xc = jnp.clip(x, -_LOGIT_CLAMP, _LOGIT_CLAMP)
        e = jnp.exp(-xc)                  # EUP 1
        log_pred = -jnp.log(1.0 + e)      # EUP 2 : log(sigmoid(xc))
        log_1m_pred = -xc + log_pred      #         log(1 - sigmoid(xc)), no extra EUP
        pred = 1.0 / (1.0 + e)            # EUP 3

        one_m_pred = 1.0 - pred
        one_m_gt = 1.0 - gt
        nw2 = one_m_gt * one_m_gt
        pos_term = log_pred * one_m_pred * one_m_pred
        neg_term = log_1m_pred * pred * pred * nw2 * nw2

        # NOTE: exact gt == 1.0 matches the reference; fragile if gt is stored bf16.
        is_pos = gt == 1.0
        elem = jnp.where(is_pos, pos_term, neg_term)

        # Mask rows that are padding in the (possibly padded) last tile.
        row0 = pl.program_id(0) * tile_rows
        rows = row0 + lax.broadcasted_iota(jnp.int32, x.shape, 0)
        valid = rows < num_rows
        elem = jnp.where(valid, elem, 0.0)
        pos_cnt = jnp.where(jnp.logical_and(valid, is_pos), 1.0, 0.0)

        out_ref[0, 0] = jnp.sum(elem)
        out_ref[0, 1] = jnp.sum(pos_cnt)

    return kernel


def focal_loss(hm_logits, hm_gt):
    B, C, H, W = hm_logits.shape
    R, HW = B * C, H * W
    x = hm_logits.reshape(R, HW)   # no dtype cast here; kernel casts after load
    g = hm_gt.reshape(R, HW)

    # Row tile: multiple of 8, sized so each input block is <= ~2 MiB. With
    # 2 inputs x 2 pipeline buffers this stays well inside the scoped-VMEM
    # limit of every generation (v5e/v6e 128 MiB, v7x 64 MiB physical).
    itemsize = max(jnp.dtype(x.dtype).itemsize, jnp.dtype(g.dtype).itemsize)
    rows_budget = max(8, ((2 * 1024 * 1024) // (HW * itemsize)) // 8 * 8)
    tile_rows = int(min(_round_up(R, 8), rows_budget))

    R_pad = _round_up(R, tile_rows)
    if R_pad != R:
        x = jnp.pad(x, ((0, R_pad - R), (0, 0)))
        g = jnp.pad(g, ((0, R_pad - R), (0, 0)))
    n_tiles = R_pad // tile_rows

    parts = pl.pallas_call(
        _make_focal_kernel(R, tile_rows),
        grid=(n_tiles,),
        out_shape=jax.ShapeDtypeStruct((n_tiles, 2), jnp.float32),
        in_specs=[
            pl.BlockSpec((tile_rows, HW), lambda i: (i, 0)),
            pl.BlockSpec((tile_rows, HW), lambda i: (i, 0)),
        ],
        out_specs=pl.BlockSpec((1, 2), lambda i: (i, 0),
                               memory_space=pltpu.MemorySpace.SMEM),
        compiler_params=pltpu.CompilerParams(
            dimension_semantics=("parallel",)),
        cost_estimate=pl.CostEstimate(
            flops=int(20 * R_pad * HW),
            transcendentals=int(3 * R_pad * HW),
            bytes_accessed=int(x.size * jnp.dtype(x.dtype).itemsize
                               + g.size * jnp.dtype(g.dtype).itemsize
                               + n_tiles * 8)),
    )(x, g)

    total = jnp.sum(parts[:, 0])
    num_pos = jnp.sum(parts[:, 1])
    return jnp.where(num_pos == 0.0, -total, -total / num_pos)


# ----------------------------------------------------------------------------
# Kernel 2: fused RegL1Loss for the 'wh' + 'reg' heads (shared gather).
# Feats stay NCHW; indices/mask/targets are read as scalars from SMEM; the
# gather is a dynamic-sublane row slice + W-wide lane one-hot reduce per index.
# ----------------------------------------------------------------------------
def _make_reg_fused_kernel(K, C, H, W):
    def kernel(ind_ref, mask_ref, wh_tgt_ref, reg_tgt_ref,
               wh_ref, reg_ref, out_ref):
        # ind_ref   (B, K)    int32  SMEM   flat spatial index  y*W + x
        # mask_ref  (B, K)    f32    SMEM
        # *_tgt_ref (B, K*C)  f32    SMEM
        # wh_ref / reg_ref    (1, C, H, W) VMEM block for the current batch
        # out_ref   (1, 3)    f32    SMEM  -> [wh_numer, reg_numer, mask_sum]
        b = pl.program_id(0)
        lane_iota = lax.broadcasted_iota(jnp.int32, (1, W), 1)   # hoisted

        def body(k, carry):
            wh_num, reg_num, msum = carry
            idx = ind_ref[b, k]
            m = mask_ref[b, k]
            y = jnp.clip(idx // W, 0, H - 1)
            xcol = jnp.clip(idx - y * W, 0, W - 1)
            sel = (lane_iota == xcol).astype(jnp.float32)        # (1, W)

            wh_k = jnp.float32(0.0)
            reg_k = jnp.float32(0.0)
            for c in range(C):                                   # C is tiny & static
                wh_row = wh_ref[0, c, pl.ds(y, 1), :].astype(jnp.float32)   # (1, W)
                reg_row = reg_ref[0, c, pl.ds(y, 1), :].astype(jnp.float32)
                wh_p = jnp.sum(wh_row * sel)
                reg_p = jnp.sum(reg_row * sel)
                wh_k = wh_k + jnp.abs(wh_p - wh_tgt_ref[b, k * C + c])
                reg_k = reg_k + jnp.abs(reg_p - reg_tgt_ref[b, k * C + c])

            return (wh_num + m * wh_k, reg_num + m * reg_k, msum + m)

        wh_num, reg_num, msum = lax.fori_loop(
            0, K, body,
            (jnp.float32(0.0), jnp.float32(0.0), jnp.float32(0.0)))

        out_ref[0, 0] = wh_num
        out_ref[0, 1] = reg_num
        out_ref[0, 2] = msum

    return kernel


def reg_l1_losses(wh_feat, reg_feat, mask, ind, wh_target, reg_target):
    """Fused RegL1Loss for the 'wh' and 'reg' heads (they share ind/mask)."""
    B, C, H, W = wh_feat.shape
    K = ind.shape[1]

    ind_i = ind.astype(jnp.int32)                           # (B, K)
    mask_f = mask.astype(jnp.float32)                       # (B, K)
    wh_t = wh_target.astype(jnp.float32).reshape(B, K * C)  # long axis last (SMEM)
    reg_t = reg_target.astype(jnp.float32).reshape(B, K * C)

    smem = pl.BlockSpec(memory_space=pltpu.MemorySpace.SMEM)
    itemsize = jnp.dtype(wh_feat.dtype).itemsize

    out = pl.pallas_call(
        _make_reg_fused_kernel(K, C, H, W),
        grid=(B,),
        out_shape=jax.ShapeDtypeStruct((B, 3), jnp.float32),
        in_specs=[
            smem,                                            # ind
            smem,                                            # mask
            smem,                                            # wh targets
            smem,                                            # reg targets
            pl.BlockSpec((1, C, H, W), lambda b: (b, 0, 0, 0)),
            pl.BlockSpec((1, C, H, W), lambda b: (b, 0, 0, 0)),
        ],
        out_specs=pl.BlockSpec((1, 3), lambda b: (b, 0),
                               memory_space=pltpu.MemorySpace.SMEM),
        compiler_params=pltpu.CompilerParams(
            dimension_semantics=("parallel",)),
        cost_estimate=pl.CostEstimate(
            flops=int(B * K * (4 * C * W + 16)),
            transcendentals=0,
            bytes_accessed=int(2 * B * C * H * W * itemsize
                               + (2 * B * K + 2 * B * K * C + 3 * B) * 4)),
    )(ind_i, mask_f, wh_t, reg_t, wh_feat, reg_feat)

    wh_num = jnp.sum(out[:, 0])
    reg_num = jnp.sum(out[:, 1])
    den = jnp.sum(out[:, 2]) * jnp.float32(C) + 1e-4
    return wh_num / den, reg_num / den


# ----------------------------------------------------------------------------
# CtdetLoss.forward (glue in plain JAX; heavy math lives in the kernels).
# ----------------------------------------------------------------------------
def ctdet_loss(outputs, batch, *, num_stacks=1, hm_weight=1.0, wh_weight=0.1,
               off_weight=1.0, reg_offset=True):
    # TODO(synk): mse_loss / dense_wh / cat_spec_wh / norm_wh / eval_oracle_*
    # branches are inactive under the default ctdet opt and are not implemented.
    hm_loss = jnp.float32(0.0)
    wh_loss = jnp.float32(0.0)
    off_loss = jnp.float32(0.0)
    for s in range(num_stacks):
        output = outputs[s]
        hm_loss = hm_loss + focal_loss(output['hm'], batch['hm']) / num_stacks

        need_wh = wh_weight > 0
        need_off = reg_offset and off_weight > 0
        if need_wh or need_off:
            wh_l, off_l = reg_l1_losses(
                output['wh'] if need_wh else output['reg'],
                output['reg'] if need_off else output['wh'],
                batch['reg_mask'], batch['ind'],
                batch['wh'] if need_wh else batch['reg'],
                batch['reg'] if need_off else batch['wh'])
            if need_wh:
                wh_loss = wh_loss + wh_l / num_stacks
            if need_off:
                off_loss = off_loss + off_l / num_stacks

    loss = hm_weight * hm_loss + wh_weight * wh_loss + off_weight * off_loss
    loss_stats = {'loss': loss, 'hm_loss': hm_loss,
                  'wh_loss': wh_loss, 'off_loss': off_loss}
    return loss, loss_stats


# ----------------------------------------------------------------------------
# Pure-JAX reference (mirrors the PyTorch module) for a correctness check.
# ----------------------------------------------------------------------------
def _ref_ctdet_loss(outputs, batch, *, num_stacks=1, hm_weight=1.0,
                    wh_weight=0.1, off_weight=1.0):
    def focal_ref(logits, gt):
        pred = jnp.clip(jax.nn.sigmoid(logits.astype(jnp.float32)), 1e-4, 1.0 - 1e-4)
        gt = gt.astype(jnp.float32)
        pos = (gt == 1.0).astype(jnp.float32)
        neg = (gt < 1.0).astype(jnp.float32)
        pos_l = jnp.sum(jnp.log(pred) * (1 - pred) ** 2 * pos)
        neg_l = jnp.sum(jnp.log(1 - pred) * pred ** 2 * (1 - gt) ** 4 * neg)
        npos = jnp.sum(pos)
        return jnp.where(npos == 0, -neg_l, -(pos_l + neg_l) / npos)

    def regl1_ref(out_nchw, mask, ind, target):
        B, C, H, W = out_nchw.shape
        K = ind.shape[1]
        feat = jnp.transpose(out_nchw, (0, 2, 3, 1)).reshape(B, H * W, C)
        idx = jnp.broadcast_to(ind[:, :, None].astype(jnp.int32), (B, K, C))
        pred = jnp.take_along_axis(feat, idx, axis=1)
        m = jnp.broadcast_to(mask[:, :, None].astype(jnp.float32), (B, K, C))
        loss = jnp.sum(jnp.abs(pred * m - target * m))
        return loss / (jnp.sum(m) + 1e-4)

    hm = wh = off = jnp.float32(0.0)
    for s in range(num_stacks):
        o = outputs[s]
        hm = hm + focal_ref(o['hm'], batch['hm']) / num_stacks
        wh = wh + regl1_ref(o['wh'], batch['reg_mask'], batch['ind'], batch['wh']) / num_stacks
        off = off + regl1_ref(o['reg'], batch['reg_mask'], batch['ind'], batch['reg']) / num_stacks
    return hm_weight * hm + wh_weight * wh + off_weight * off, hm, wh, off


if __name__ == "__main__":
    key = jax.random.PRNGKey(0)
    B, NUM_CLASSES, H, W = 2, 4, 16, 16
    K = 8  # max objects per image

    ks = jax.random.split(key, 8)

    # Network outputs (NCHW, as PyTorch would produce).
    hm_logits = jax.random.normal(ks[0], (B, NUM_CLASSES, H, W), jnp.float32)
    wh_out = jax.random.normal(ks[1], (B, 2, H, W), jnp.float32)
    reg_out = jax.random.normal(ks[2], (B, 2, H, W), jnp.float32)
    outputs = [{'hm': hm_logits, 'wh': wh_out, 'reg': reg_out}]

    # Ground-truth batch.
    hm_gt = jax.random.uniform(ks[3], (B, NUM_CLASSES, H, W), jnp.float32) ** 4
    ind = jax.random.randint(ks[4], (B, K), 0, H * W, jnp.int32)
    # First few objects valid per image.
    reg_mask = (jnp.arange(K)[None, :] < jnp.array([[5], [3]])).astype(jnp.float32)
    # Plant exact-1.0 peaks at the object locations (class 0) so num_pos > 0.
    ys, xs = ind // W, ind % W
    b_idx = jnp.repeat(jnp.arange(B), K)
    hm_gt = hm_gt.at[b_idx, 0, ys.reshape(-1), xs.reshape(-1)].set(
        jnp.where(reg_mask.reshape(-1) > 0, 1.0,
                  hm_gt[b_idx, 0, ys.reshape(-1), xs.reshape(-1)]))
    wh_gt = jax.random.uniform(ks[5], (B, K, 2), jnp.float32) * 10.0
    reg_gt = jax.random.uniform(ks[6], (B, K, 2), jnp.float32)

    batch = {'hm': hm_gt, 'reg_mask': reg_mask, 'ind': ind,
             'wh': wh_gt, 'reg': reg_gt}

    loss, stats = ctdet_loss(outputs, batch)
    loss = jax.block_until_ready(loss)
    for v in stats.values():
        jax.block_until_ready(v)

    ref_loss, ref_hm, ref_wh, ref_off = _ref_ctdet_loss(outputs, batch)
    ref_loss = jax.block_until_ready(ref_loss)

    assert jnp.allclose(stats['hm_loss'], ref_hm, rtol=1e-4, atol=1e-5), (
        stats['hm_loss'], ref_hm)
    assert jnp.allclose(stats['wh_loss'], ref_wh, rtol=1e-4, atol=1e-5), (
        stats['wh_loss'], ref_wh)
    assert jnp.allclose(stats['off_loss'], ref_off, rtol=1e-4, atol=1e-5), (
        stats['off_loss'], ref_off)
    assert jnp.allclose(loss, ref_loss, rtol=1e-4, atol=1e-5), (loss, ref_loss)

    print("KERNEL_OK")
</pallas_src>

<mosaic_0001>
module attributes {stable_mosaic.version = 11 : i64} {
  func.func @kernel(%arg0: i32, %arg1: memref<8x256xf32, #tpu.memory_space<vmem>>, %arg2: memref<8x256xf32, #tpu.memory_space<vmem>>, %arg3: memref<1x2xf32, #tpu.memory_space<smem>>) attributes {dimension_semantics = [#tpu.dimension_semantics<parallel>], iteration_bounds = array<i64: 1>, scalar_prefetch = 0 : i64, scratch_operands = 0 : i64, tpu.core_type = #tpu.core_type<tc>, window_params = [{transform_indices = @transform_0, window_bounds = array<i64: 8, 256>}, {transform_indices = @transform_1, window_bounds = array<i64: 8, 256>}, {transform_indices = @transform_2, window_bounds = array<i64: 1, 2>}]} {
    %c0 = arith.constant 0 : index
    %c0_0 = arith.constant 0 : index
    %0 = vector.load %arg1[%c0, %c0_0] : memref<8x256xf32, #tpu.memory_space<vmem>>, vector<8x256xf32>
    %c0_1 = arith.constant 0 : index
    %c0_2 = arith.constant 0 : index
    %1 = vector.load %arg2[%c0_1, %c0_2] : memref<8x256xf32, #tpu.memory_space<vmem>>, vector<8x256xf32>
    %cst = arith.constant -9.210240e+00 : f32
    %cst_3 = arith.constant 9.210240e+00 : f32
    %2 = vector.broadcast %cst : f32 to vector<8x256xf32>
    %3 = arith.maximumf %2, %0 : vector<8x256xf32>
    %4 = vector.broadcast %cst_3 : f32 to vector<8x256xf32>
    %5 = arith.minimumf %4, %3 : vector<8x256xf32>
    %cst_4 = arith.constant 0.000000e+00 : f32
    %6 = vector.broadcast %cst_4 : f32 to vector<8x256xf32>
    %7 = arith.subf %6, %5 : vector<8x256xf32>
    %8 = math.exp %7 : vector<8x256xf32>
    %cst_5 = arith.constant 1.000000e+00 : f32
    %9 = vector.broadcast %cst_5 : f32 to vector<8x256xf32>
    %10 = arith.addf %9, %8 : vector<8x256xf32>
    %11 = math.log %10 : vector<8x256xf32>
    %cst_6 = arith.constant 0.000000e+00 : f32
    %12 = vector.broadcast %cst_6 : f32 to vector<8x256xf32>
    %13 = arith.subf %12, %11 : vector<8x256xf32>
    %cst_7 = arith.constant 0.000000e+00 : f32
    %14 = vector.broadcast %cst_7 : f32 to vector<8x256xf32>
    %15 = arith.subf %14, %5 : vector<8x256xf32>
    %16 = arith.addf %15, %13 : vector<8x256xf32>
    %cst_8 = arith.constant 1.000000e+00 : f32
    %17 = vector.broadcast %cst_8 : f32 to vector<8x256xf32>
    %18 = arith.addf %17, %8 : vector<8x256xf32>
    %cst_9 = arith.constant 1.000000e+00 : f32
    %19 = vector.broadcast %cst_9 : f32 to vector<8x256xf32>
    %20 = arith.divf %19, %18 : vector<8x256xf32>
    %cst_10 = arith.constant 1.000000e+00 : f32
    %21 = vector.broadcast %cst_10 : f32 to vector<8x256xf32>
    %22 = arith.subf %21, %20 : vector<8x256xf32>
    %cst_11 = arith.constant 1.000000e+00 : f32
    %23 = vector.broadcast %cst_11 : f32 to vector<8x256xf32>
    %24 = arith.subf %23, %1 : vector<8x256xf32>
    %25 = arith.mulf %24, %24 : vector<8x256xf32>
    %26 = arith.mulf %13, %22 : vector<8x256xf32>
    %27 = arith.mulf %26, %22 : vector<8x256xf32>
    %28 = arith.mulf %16, %20 : vector<8x256xf32>
    %29 = arith.mulf %28, %20 : vector<8x256xf32>
    %30 = arith.mulf %29, %25 : vector<8x256xf32>
    %31 = arith.mulf %30, %25 : vector<8x256xf32>
    %cst_12 = arith.constant 1.000000e+00 : f32
    %32 = vector.broadcast %cst_12 : f32 to vector<8x256xf32>
    %33 = arith.cmpf oeq, %1, %32 : vector<8x256xf32>
    %34 = arith.select %33, %27, %31 : vector<8x256xi1>, vector<8x256xf32>
    %c8_i32 = arith.constant 8 : i32
    %35 = arith.muli %arg0, %c8_i32 : i32
    %36 = tpu.iota {dimensions = array<i32: 0>} : vector<8x256xi32>
    %37 = vector.broadcast %35 : i32 to vector<8x256xi32>
    %38 = arith.addi %37, %36 : vector<8x256xi32>
    %c8_i32_13 = arith.constant 8 : i32
    %39 = vector.broadcast %c8_i32_13 : i32 to vector<8x256xi32>
    %40 = arith.cmpi slt, %38, %39 : vector<8x256xi32>
    %cst_14 = arith.constant 0.000000e+00 : f32
    %41 = vector.broadcast %cst_14 : f32 to vector<8x256xf32>
    %42 = arith.select %40, %34, %41 : vector<8x256xi1>, vector<8x256xf32>
    %43 = arith.andi %40, %33 : vector<8x256xi1>
    %cst_15 = arith.constant 1.000000e+00 : f32
    %cst_16 = arith.constant 0.000000e+00 : f32
    %44 = vector.broadcast %cst_15 : f32 to vector<8x256xf32>
    %45 = vector.broadcast %cst_16 : f32 to vector<8x256xf32>
    %46 = arith.select %43, %44, %45 : vector<8x256xi1>, vector<8x256xf32>
    %47 = vector.shape_cast %42 : vector<8x256xf32> to vector<1x8x256xf32>
    %cst_17 = arith.constant dense<0.000000e+00> : vector<1xf32>
    %48 = vector.multi_reduction <add>, %47, %cst_17 [1, 2] : vector<1x8x256xf32> to vector<1xf32>
    %49 = vector.shape_cast %48 : vector<1xf32> to vector<1x1x1xf32>
    %50 = vector.extract %49[0, 0, 0] : f32 from vector<1x1x1xf32>
    %c0_18 = arith.constant 0 : index
    %c0_19 = arith.constant 0 : index
    %51 = memref.load %arg3[%c0_18, %c0_19] : memref<1x2xf32, #tpu.memory_space<smem>>
    memref.store %50, %arg3[%c0_18, %c0_19] : memref<1x2xf32, #tpu.memory_space<smem>>
    %52 = vector.shape_cast %46 : vector<8x256xf32> to vector<1x8x256xf32>
    %cst_20 = arith.constant dense<0.000000e+00> : vector<1xf32>
    %53 = vector.multi_reduction <add>, %52, %cst_20 [1, 2] : vector<1x8x256xf32> to vector<1xf32>
    %54 = vector.shape_cast %53 : vector<1xf32> to vector<1x1x1xf32>
    %55 = vector.extract %54[0, 0, 0] : f32 from vector<1x1x1xf32>
    %c0_21 = arith.constant 0 : index
    %c1 = arith.constant 1 : index
    %56 = memref.load %arg3[%c0_21, %c1] : memref<1x2xf32, #tpu.memory_space<smem>>
    memref.store %55, %arg3[%c0_21, %c1] : memref<1x2xf32, #tpu.memory_space<smem>>
    return
  }
  func.func @transform_0(%arg0: i32) -> (i32, i32) {
    %c0_i32 = arith.constant 0 : i32
    %c0_i32_0 = arith.constant 0 : i32
    return %arg0, %c0_i32 : i32, i32
  }
  func.func @transform_1(%arg0: i32) -> (i32, i32) {
    %c0_i32 = arith.constant 0 : i32
    %c0_i32_0 = arith.constant 0 : i32
    return %arg0, %c0_i32 : i32, i32
  }
  func.func @transform_2(%arg0: i32) -> (i32, i32) {
    %c0_i32 = arith.constant 0 : i32
    %c0_i32_0 = arith.constant 0 : i32
    return %arg0, %c0_i32 : i32, i32
  }
}

</mosaic_0001>

<llo_original>
// kernel: tpu_custom_call.1
$region0: #{tpu_custom_call.1}
  #allocation0 [shape = 'u32[]', space=smem, size = 0x4, offset = 0x4, fixed_abs, tag = 'smem constant byte address 0x4 - core index']
  #allocation1 [shape = 'u32[144,128]{1,0:T(1,128)}', space=vmem, size = 0x12000, scoped, tag = 'internal scratch']
  %s0 = inlined_call_operand.hbm [shape: f32[8,256], index: 0, kind: input, shape index: {}]
  %s1 = inlined_call_operand.hbm [shape: f32[8,256], index: 1, kind: input, shape index: {}]
  %s2 = inlined_call_operand.hbm [shape: f32[1,2], index: 2, kind: output, shape index: {}]
  %s3 = sld [smem:[#allocation0]]
  $region26: #{tpu_custom_call.1} parent=0
    _
  %s5 = ssub.s32 1, %s3
  %s6 = scalar_select 0, %s5, %s3
  $region1: #{tpu_custom_call.1} parent=0
    #allocation2 [shape = 'u8[8192]{0}', space=vmem, size = 0x2000, scoped, tag = 'input window, operand 0, single buffered']
    #allocation3 [shape = 's32[1]{0}', space=sflag, size = 0x4, scoped, tag = 'scoped memory for tpu_custom_call.1']
    #allocation4 [shape = 's32[1]{0}', space=sflag, size = 0x4, scoped, tag = 'scoped memory for tpu_custom_call.1']
    #allocation5 [shape = 'u8[8192]{0}', space=vmem, size = 0x2000, scoped, tag = 'input window, operand 1, single buffered']
    #allocation6 [shape = 's32[1]{0}', space=sflag, size = 0x4, scoped, tag = 'scoped memory for tpu_custom_call.1']
    #allocation7 [shape = 'u8[512]{0}', space=smem, size = 0x200, scoped, tag = 'output window, operand 0, single buffered']
    %7 = vsyncpa [#allocation3], 0
    %8 = vsyncpa [#allocation6], 0
    %9 = vsyncpa [#allocation4], 0
    // Predicated region
    $region2: #{tpu_custom_call.1} parent=1 // pred_check
      _
    $region3: #{tpu_custom_call.1} parent=1 // pred_check_branch
      %11 = sbr.rel (0) target = $region5
    $region4: #{tpu_custom_call.1} parent=1 // pred_region
      %s13 = ssub.s32 256, 256
      %14 = vsyncadd [#allocation3], %s13
      %s16 = sshll.u32 [#allocation2], 4
      %s17 = int_to_ptr.vmem [resolvable:$true] %s16
      %19 = dma.hbm_to_vmem [thread:$0]  %s0, 256, %s17, [#allocation3]
    $region5: #{tpu_custom_call.1} parent=1 // pred_fallthru
      _
    // Predicated region
    $region6: #{tpu_custom_call.1} parent=1 // pred_check
      _
    $region7: #{tpu_custom_call.1} parent=1 // pred_check_branch
      %21 = sbr.rel (0) target = $region9
    $region8: #{tpu_custom_call.1} parent=1 // pred_region
      %s23 = ssub.s32 256, 256
      %24 = vsyncadd [#allocation6], %s23
      %s26 = sshll.u32 [#allocation5], 4
      %s27 = int_to_ptr.vmem [resolvable:$true] %s26
      %29 = dma.hbm_to_vmem [thread:$0]  %s1, 256, %s27, [#allocation6]
    $region9: #{tpu_custom_call.1} parent=1 // pred_fallthru
      _
    // Predicated region
    $region10: #{tpu_custom_call.1} parent=1 // pred_check
      _
    $region11: #{tpu_custom_call.1} parent=1 // pred_check_branch
      %31 = sbr.rel (0) target = $region13
    $region12: #{tpu_custom_call.1} parent=1 // pred_region
      %32 = dma.done [#allocation3], 256
    $region13: #{tpu_custom_call.1} parent=1 // pred_fallthru
      _
    // Predicated region
    $region14: #{tpu_custom_call.1} parent=1 // pred_check
      _
    $region15: #{tpu_custom_call.1} parent=1 // pred_check_branch
      %34 = sbr.rel (0) target = $region17
    $region16: #{tpu_custom_call.1} parent=1 // pred_region
      %35 = dma.done [#allocation6], 256
    $region17: #{tpu_custom_call.1} parent=1 // pred_fallthru
      _
    %v36 = vld [vmem:[#allocation2] sm:$0xff]
    %v37 = vld [vmem:[#allocation2 + $0x8] sm:$0xff]
    %v38 = vld [vmem:[#allocation5] sm:$0xff]
    %v39 = vld [vmem:[#allocation5 + $0x8] sm:$0xff]
    %v40 = vmax.f32 %v36, -9.21024
    %v41 = vmax.f32 %v37, -9.21024
    %v42 = vmin.f32 %v40, 9.21024
    %v43 = vmin.f32 %v41, 9.21024
    %v44 = vsub.f32 0.0, %v42
    %v45 = vsub.f32 0.0, %v43
    %v46 = vmul.f32 %v44, 1.442695
    %v47 = vpow.pop %v46
    %v48 = vmul.f32 %v45, 1.442695
    %v49 = vpow.pop %v48
    %v50 = vadd.f32 %v47, 1.0
    %v51 = vadd.f32 %v49, 1.0
    %v52 = vlog2.pop %v50
    %v53 = vmul.f32 %v52, 0.6931472
    %v54 = vlog2.pop %v51
    %v55 = vmul.f32 %v54, 0.6931472
    %v56 = vsub.f32 0.0, %v53
    %v57 = vsub.f32 0.0, %v55
    %v58 = vadd.f32 %v44, %v56
    %v59 = vadd.f32 %v45, %v57
    %v60 = vrcp.pop %v50
    %v61 = vmul.f32 1.0, %v60
    %v62 = vrcp.pop %v51
    %v63 = vmul.f32 1.0, %v62
    %v64 = vsub.f32 1.0, %v61
    %v65 = vsub.f32 1.0, %v63
    %v66 = vsub.f32 1.0, %v38
    %v67 = vsub.f32 1.0, %v39
    %v68 = vmul.f32 %v66, %v66
    %v69 = vmul.f32 %v67, %v67
    %v70 = vmul.f32 %v56, %v64
    %v71 = vmul.f32 %v57, %v65
    %v72 = vmul.f32 %v70, %v64
    %v73 = vmul.f32 %v71, %v65
    %v74 = vmul.f32 %v58, %v61
    %v75 = vmul.f32 %v59, %v63
    %v76 = vmul.f32 %v74, %v61
    %v77 = vmul.f32 %v75, %v63
    %v78 = vmul.f32 %v76, %v68
    %v79 = vmul.f32 %v77, %v69
    %v80 = vmul.f32 %v78, %v68
    %v81 = vmul.f32 %v79, %v69
    %vm82 = vcmp.eq.f32.partialorder %v38, 1.0
    %vm83 = vcmp.eq.f32.partialorder %v39, 1.0
    %v84 = vsel %vm82, %v72, %v80
    %v85 = vsel %vm83, %v73, %v81
    %s86 = smul.u32 0, 8
    %v87 = vlaneseq
    %v88 = vshrl.u32 %v87, 7
    %v89 = vstv %s86
    %v90 = vadd.s32 %v89, %v88
    %vm91 = vcmp.lt.s32.totalorder %v90, 8
    %v92 = vsel %vm91, %v84, 0.0
    %v93 = vsel %vm91, %v85, 0.0
    %vm94 = vmand %vm91, %vm82
    %vm95 = vmand %vm91, %vm83
    %v96 = vsel %vm94, 1.0, 0.0
    %v97 = vsel %vm95, 1.0, 0.0
    %v98 = vadd.f32 %v92, %v93
    %99 = vadd.xlane.f32.xlu0 %v98
    %v100 = vpop.xlane.xlu0 %99
    %v101 = vrot.slane %v100, 4
    %v102 = vadd.f32 %v100, %v101
    %v103 = vrot.slane %v102, 2
    %v104 = vadd.f32 %v102, %v103
    %v105 = vrot.slane %v104, 1
    %v106 = vadd.f32 %v104, %v105
    %s107 = vtos %v106
    %s108 = scalar_lea.smem [#allocation7], 0
    %109 = sst [smem:[%s108]] %s107
    %v110 = vadd.f32 %v96, %v97
    %111 = vadd.xlane.f32.xlu0 %v110
    %v112 = vpop.xlane.xlu0 %111
    %v113 = vrot.slane %v112, 4
    %v114 = vadd.f32 %v112, %v113
    %v115 = vrot.slane %v114, 2
    %v116 = vadd.f32 %v114, %v115
    %v117 = vrot.slane %v116, 1
    %v118 = vadd.f32 %v116, %v117
    %s119 = vtos %v118
    %s120 = scalar_lea.smem [#allocation7], 1
    %121 = sst [smem:[%s120]] %s119
    // Predicated region
    $region18: #{tpu_custom_call.1} parent=1 // pred_check
      _
    $region19: #{tpu_custom_call.1} parent=1 // pred_check_branch
      %123 = sbr.rel (0) target = $region21
    $region20: #{tpu_custom_call.1} parent=1 // pred_region
      %s125 = ssub.s32 16, 16
      %126 = vsyncadd [#allocation4], %s125
      %129 = dma.smem_to_hbm [#allocation7], 16, %s2, [#allocation4]
    $region21: #{tpu_custom_call.1} parent=1 // pred_fallthru
      _
    // Predicated region
    $region22: #{tpu_custom_call.1} parent=1 // pred_check
      _
    $region23: #{tpu_custom_call.1} parent=1 // pred_check_branch
      %131 = sbr.rel (0) target = $region25
    $region24: #{tpu_custom_call.1} parent=1 // pred_region
      %132 = dma.done [#allocation4], 16
    $region25: #{tpu_custom_call.1} parent=1 // pred_fallthru
      _
    %133 = sfence
    %134 = vsyncpa [#allocation3], 1
    %135 = vsyncpa [#allocation6], 1
    %136 = vsyncpa [#allocation4], 1

</llo_original>
